<compile_context>
chip_gen: v7x
topology: tpu7x:2x2x1
jax: 0.10.0
libtpu: 0.0.40
codegen_flags: <defaults>
</compile_context>

<pallas_src>
import functools

import jax
import jax.numpy as jnp
from jax.experimental import pallas as pl
from jax.experimental.pallas import tpu as pltpu


def _tar_partial_kernel(x_ref, sq_out_ref, ct_out_ref, acc_sq_ref, acc_ct_ref,
                        *, ignore_index, total_rows, tile_rows, chunk_rows,
                        n_chunks, tiles_per_split, unroll):
    c = pl.program_id(0)            # core split ("parallel")
    i = pl.program_id(1)            # streaming step within split ("arbitrary")

    @pl.when(i == 0)
    def _init():
        acc_sq_ref[...] = jnp.zeros_like(acc_sq_ref)
        acc_ct_ref[...] = jnp.zeros_like(acc_ct_ref)

    ignore = jnp.asarray(ignore_index, dtype=x_ref.dtype)
    tile_idx = c * tiles_per_split + i            # global (unclamped) tile idx
    row_start = tile_idx * tile_rows
    # Tile extends past the true row extent (ragged last tile, or a padded
    # grid step of the core split whose block index was clamped)?
    is_edge = (row_start + tile_rows) > total_rows

    def accumulate(masked):
        if masked:
            rows_iota = jax.lax.broadcasted_iota(
                jnp.int32, (chunk_rows, x_ref.shape[1]), 0)

        def body(j, carry):
            sq, ct = carry
            r0 = pl.multiple_of(j * chunk_rows, chunk_rows)
            xc = x_ref[pl.ds(r0, chunk_rows), :]
            valid = xc != ignore
            if masked:
                # Rows at / beyond `total_rows` contribute nothing.
                limit = total_rows - row_start - r0
                valid = jnp.logical_and(valid, rows_iota < limit)
            xf = xc.astype(jnp.float32)
            # Select-based masking: garbage (NaN/Inf) in out-of-bounds rows is
            # dropped by the select, never multiplied in.
            sq = sq + jnp.where(valid, xf * xf, jnp.float32(0.0))
            # TODO(synk): if a v7x bundle dump shows the VALU slot saturating,
            # offload this count accumulation to the idle MXU (mask @ ones).
            ct = ct + valid.astype(jnp.float32)
            return sq, ct

        zero = jnp.zeros(acc_sq_ref.shape, jnp.float32)
        sq, ct = jax.lax.fori_loop(0, n_chunks, body, (zero, zero),
                                   unroll=unroll)
        acc_sq_ref[...] += sq
        acc_ct_ref[...] += ct

    @pl.when(jnp.logical_not(is_edge))
    def _full_tile():
        accumulate(masked=False)

    @pl.when(is_edge)
    def _edge_tile():
        accumulate(masked=True)

    @pl.when(i == pl.num_programs(1) - 1)
    def _finalize():
        sq_out_ref[...] = jnp.full(sq_out_ref.shape,
                                   jnp.sum(acc_sq_ref[...]), jnp.float32)
        ct_out_ref[...] = jnp.full(ct_out_ref.shape,
                                   jnp.sum(acc_ct_ref[...]), jnp.float32)


def _pick_lanes(n):
    for cand in (512, 256, 128):
        if n % cand == 0:
            return cand
    return 128


def _block_bytes_and_vmem_limit():
    """Per-generation input block size (double-buffering accounted for)."""
    try:
        vmem_capacity = getattr(pltpu.get_tpu_info(), "vmem_capacity_bytes",
                                64 * 1024 * 1024)
    except Exception:                       # conservative (v7x-sized VMEM)
        vmem_capacity = 64 * 1024 * 1024
    if vmem_capacity >= 100 * 1024 * 1024:  # v5e / v6e: 128 MiB per core
        return 8 * 1024 * 1024, 48 * 1024 * 1024
    # v7x: 64 MiB per core; 2x block (double-buffer) + scratch needs headroom.
    return 12 * 1024 * 1024, 40 * 1024 * 1024


def tar_loss(prob, ignore_index=255, num_class=19):
    """prob: (B, C, H, W) float array.  Returns the scalar TAR loss (f32)."""
    del num_class                       # unused in forward, kept for API parity
    n = prob.size
    flat = prob.reshape(-1)
    dtype = flat.dtype
    ignore = jnp.asarray(ignore_index, dtype=dtype)

    def jax_partial(v):                 # tiny pure-JAX partial (tail / fallback)
        mask = v != ignore
        vf = v.astype(jnp.float32)
        return (jnp.sum(jnp.where(mask, vf * vf, jnp.float32(0.0))),
                jnp.sum(mask.astype(jnp.float32)))

    lanes = _pick_lanes(n)
    m = n // lanes
    tail_len = n - m * lanes            # < 128; nonzero only when 128 !| n

    if m == 0:                          # pathologically tiny input
        total_sq, total_ct = jax_partial(flat)
        return -(total_sq / total_ct) * jnp.float32(0.5)

    if tail_len:
        # TODO(synk): XLA may materialize this prefix slice as a copy; a 1-D
        # flat-index-masked last block would avoid it when N % 128 != 0.
        main, tail = flat[:m * lanes], flat[m * lanes:]
    else:
        main, tail = flat, None
    x = main.reshape(m, lanes)

    # --- tiling ---------------------------------------------------------------
    block_bytes, vmem_limit = _block_bytes_and_vmem_limit()
    itemsize = jnp.dtype(dtype).itemsize
    rows_target = max(8, block_bytes // (lanes * itemsize))

    if m < 8:
        chunk_rows, n_chunks = m, 1                   # single full-extent tile
    else:
        chunk_rows = 8
        n_chunks = max(1, min(rows_target // chunk_rows, m // chunk_rows))
    tile_rows = chunk_rows * n_chunks
    total_tiles = pl.cdiv(m, tile_rows)

    num_splits = 2 if total_tiles >= 2 else 1   # v7x: one split per TensorCore
    tiles_per_split = pl.cdiv(total_tiles, num_splits)
    unroll = min(4, n_chunks)
    last_tile = total_tiles - 1

    kernel = functools.partial(
        _tar_partial_kernel,
        ignore_index=float(ignore_index),
        total_rows=m,
        tile_rows=tile_rows,
        chunk_rows=chunk_rows,
        n_chunks=n_chunks,
        tiles_per_split=tiles_per_split,
        unroll=unroll,
    )

    def x_index_map(c, i):
        # Clamp padded grid steps of the core split onto the last real tile;
        # their rows are masked out in-kernel.
        return (jnp.minimum(c * tiles_per_split + i, last_tile), 0)

    out_shape = jax.ShapeDtypeStruct((num_splits, 8, 128), jnp.float32)

    partial_sq, partial_ct = pl.pallas_call(
        kernel,
        out_shape=(out_shape, out_shape),
        grid_spec=pltpu.PrefetchScalarGridSpec(
            num_scalar_prefetch=0,
            grid=(num_splits, tiles_per_split),
            in_specs=[pl.BlockSpec((tile_rows, lanes), x_index_map)],
            out_specs=[pl.BlockSpec((1, 8, 128), lambda c, i: (c, 0, 0)),
                       pl.BlockSpec((1, 8, 128), lambda c, i: (c, 0, 0))],
            scratch_shapes=[
                pltpu.VMEM((chunk_rows, lanes), jnp.float32),  # sum of squares
                pltpu.VMEM((chunk_rows, lanes), jnp.float32),  # masked count
            ],
        ),
        compiler_params=pltpu.CompilerParams(
            dimension_semantics=("parallel", "arbitrary"),
            vmem_limit_bytes=vmem_limit,
        ),
    )(x)

    total_sq = jnp.sum(partial_sq[:, 0, 0])
    total_ct = jnp.sum(partial_ct[:, 0, 0])
    if tail is not None:
        tail_sq, tail_ct = jax_partial(tail)
        total_sq = total_sq + tail_sq
        total_ct = total_ct + tail_ct
    # Note: if every element == ignore_index, total_ct == 0 and the result is
    # Inf/NaN, which matches the reference semantics.
    return -(total_sq / total_ct) * jnp.float32(0.5)


def tar_loss_ref(prob, ignore_index=255):
    """Pure-JAX reference matching the PyTorch module."""
    mask = prob != ignore_index
    sq = jnp.where(mask, prob.astype(jnp.float32) ** 2, 0.0)
    return -(jnp.sum(sq) / jnp.sum(mask)) / 2.0


if __name__ == "__main__":
    key = jax.random.PRNGKey(0)

    # Primary test: NCHW with num_class = 19 channels of "probabilities".
    B, C, H, W = 2, 19, 16, 16
    prob = jax.random.uniform(key, (B, C, H, W), dtype=jnp.float32)
    prob = prob.at[0, 0, 0, :4].set(255.0)   # sprinkle ignore_index values
    prob = prob.at[1, 3, 7, 5].set(255.0)

    loss = jax.block_until_ready(jax.jit(tar_loss)(prob))
    ref = jax.block_until_ready(tar_loss_ref(prob))
    assert jnp.allclose(loss, ref, rtol=1e-5, atol=1e-6), (loss, ref)

    # Secondary test: element count not a multiple of 128 (pure-JAX tail path).
    prob2 = jax.random.uniform(jax.random.PRNGKey(1), (2, 4, 15, 7),
                               dtype=jnp.float32)
    prob2 = prob2.at[0, 1, 2, 3].set(255.0)
    loss2 = jax.block_until_ready(jax.jit(tar_loss)(prob2))
    ref2 = jax.block_until_ready(tar_loss_ref(prob2))
    assert jnp.allclose(loss2, ref2, rtol=1e-5, atol=1e-6), (loss2, ref2)

    print("KERNEL_OK")
</pallas_src>

<mosaic_0001>
module attributes {stable_mosaic.version = 11 : i64} {
  func.func @_tar_partial_kernel(%arg0: i32, %arg1: i32, %arg2: memref<16x512xf32, #tpu.memory_space<vmem>>, %arg3: memref<1x8x128xf32, #tpu.memory_space<vmem>>, %arg4: memref<1x8x128xf32, #tpu.memory_space<vmem>>, %arg5: memref<8x512xf32, #tpu.memory_space<vmem>>, %arg6: memref<8x512xf32, #tpu.memory_space<vmem>>) attributes {dimension_semantics = [#tpu.dimension_semantics<parallel>, #tpu.dimension_semantics<arbitrary>], iteration_bounds = array<i64: 2, 1>, scalar_prefetch = 0 : i64, scratch_operands = 2 : i64, tpu.core_type = #tpu.core_type<tc>, window_params = [{transform_indices = @transform_0, window_bounds = array<i64: 16, 512>}, {transform_indices = @transform_1, window_bounds = array<i64: 1, 8, 128>}, {transform_indices = @transform_2, window_bounds = array<i64: 1, 8, 128>}]} {
    %c0_i32 = arith.constant 0 : i32
    %0 = arith.cmpi eq, %arg1, %c0_i32 : i32
    %1 = arith.extui %0 : i1 to i32
    %c0_i32_0 = arith.constant 0 : i32
    %2 = arith.cmpi ne, %1, %c0_i32_0 : i32
    scf.if %2 {
      %cst_7 = arith.constant 0.000000e+00 : f32
      %16 = vector.broadcast %cst_7 : f32 to vector<8x512xf32>
      %c0 = arith.constant 0 : index
      %c0_8 = arith.constant 0 : index
      %17 = vector.load %arg5[%c0, %c0_8] : memref<8x512xf32, #tpu.memory_space<vmem>>, vector<8x512xf32>
      tpu.vector_store %arg5[%c0, %c0_8], %16 {strides = array<i32>} : memref<8x512xf32, #tpu.memory_space<vmem>>, vector<8x512xf32>,
      %cst_9 = arith.constant 0.000000e+00 : f32
      %18 = vector.broadcast %cst_9 : f32 to vector<8x512xf32>
      %c0_10 = arith.constant 0 : index
      %c0_11 = arith.constant 0 : index
      %19 = vector.load %arg6[%c0_10, %c0_11] : memref<8x512xf32, #tpu.memory_space<vmem>>, vector<8x512xf32>
      tpu.vector_store %arg6[%c0_10, %c0_11], %18 {strides = array<i32>} : memref<8x512xf32, #tpu.memory_space<vmem>>, vector<8x512xf32>,
    } else {
    }
    %c1_i32 = arith.constant 1 : i32
    %3 = arith.muli %arg0, %c1_i32 : i32
    %4 = arith.addi %3, %arg1 : i32
    %c16_i32 = arith.constant 16 : i32
    %5 = arith.muli %4, %c16_i32 : i32
    %c16_i32_1 = arith.constant 16 : i32
    %6 = arith.addi %5, %c16_i32_1 : i32
    %c19_i32 = arith.constant 19 : i32
    %7 = arith.cmpi sgt, %6, %c19_i32 : i32
    %true = arith.constant true
    %8 = arith.xori %7, %true : i1
    %9 = arith.extui %8 : i1 to i32
    %cst = arith.constant 2.550000e+02 : f32
    %c0_i32_2 = arith.constant 0 : i32
    %10 = arith.cmpi ne, %9, %c0_i32_2 : i32
    scf.if %10 {
      %cst_7 = arith.constant 0.000000e+00 : f32
      %16 = vector.broadcast %cst_7 : f32 to vector<8x512xf32>
      %c0_i32_8 = arith.constant 0 : i32
      %c8_i32 = arith.constant 8 : i32
      %17 = arith.muli %c0_i32_8, %c8_i32 : i32
      %18 = tpu.assume_multiple %17, 8 : i32
      %19 = arith.index_cast %18 : i32 to index
      %c0 = arith.constant 0 : index
      %20 = vector.load %arg2[%19, %c0] : memref<16x512xf32, #tpu.memory_space<vmem>>, vector<8x512xf32>
      %21 = vector.broadcast %cst : f32 to vector<8x512xf32>
      %22 = arith.cmpf one, %20, %21 : vector<8x512xf32>
      %23 = arith.mulf %20, %20 : vector<8x512xf32>
      %cst_9 = arith.constant 0.000000e+00 : f32
      %24 = vector.broadcast %cst_9 : f32 to vector<8x512xf32>
      %25 = arith.select %22, %23, %24 : vector<8x512xi1>, vector<8x512xf32>
      %26 = arith.addf %16, %25 : vector<8x512xf32>
      %27 = arith.extui %22 : vector<8x512xi1> to vector<8x512xi32>
      %28 = arith.sitofp %27 : vector<8x512xi32> to vector<8x512xf32>
      %29 = arith.addf %16, %28 : vector<8x512xf32>
      %c1_i32_10 = arith.constant 1 : i32
      %c8_i32_11 = arith.constant 8 : i32
      %30 = arith.muli %c1_i32_10, %c8_i32_11 : i32
      %31 = tpu.assume_multiple %30, 8 : i32
      %32 = arith.index_cast %31 : i32 to index
      %c0_12 = arith.constant 0 : index
      %33 = vector.load %arg2[%32, %c0_12] : memref<16x512xf32, #tpu.memory_space<vmem>>, vector<8x512xf32>
      %34 = vector.broadcast %cst : f32 to vector<8x512xf32>
      %35 = arith.cmpf one, %33, %34 : vector<8x512xf32>
      %36 = arith.mulf %33, %33 : vector<8x512xf32>
      %cst_13 = arith.constant 0.000000e+00 : f32
      %37 = vector.broadcast %cst_13 : f32 to vector<8x512xf32>
      %38 = arith.select %35, %36, %37 : vector<8x512xi1>, vector<8x512xf32>
      %39 = arith.addf %26, %38 : vector<8x512xf32>
      %40 = arith.extui %35 : vector<8x512xi1> to vector<8x512xi32>
      %41 = arith.sitofp %40 : vector<8x512xi32> to vector<8x512xf32>
      %42 = arith.addf %29, %41 : vector<8x512xf32>
      %c2_i32 = arith.constant 2 : i32
      %c0_14 = arith.constant 0 : index
      %c0_15 = arith.constant 0 : index
      %43 = vector.load %arg5[%c0_14, %c0_15] : memref<8x512xf32, #tpu.memory_space<vmem>>, vector<8x512xf32>
      %44 = arith.addf %43, %39 : vector<8x512xf32>
      %c0_16 = arith.constant 0 : index
      %c0_17 = arith.constant 0 : index
      %45 = vector.load %arg5[%c0_16, %c0_17] : memref<8x512xf32, #tpu.memory_space<vmem>>, vector<8x512xf32>
      tpu.vector_store %arg5[%c0_16, %c0_17], %44 {strides = array<i32>} : memref<8x512xf32, #tpu.memory_space<vmem>>, vector<8x512xf32>,
      %c0_18 = arith.constant 0 : index
      %c0_19 = arith.constant 0 : index
      %46 = vector.load %arg6[%c0_18, %c0_19] : memref<8x512xf32, #tpu.memory_space<vmem>>, vector<8x512xf32>
      %47 = arith.addf %46, %42 : vector<8x512xf32>
      %c0_20 = arith.constant 0 : index
      %c0_21 = arith.constant 0 : index
      %48 = vector.load %arg6[%c0_20, %c0_21] : memref<8x512xf32, #tpu.memory_space<vmem>>, vector<8x512xf32>
      tpu.vector_store %arg6[%c0_20, %c0_21], %47 {strides = array<i32>} : memref<8x512xf32, #tpu.memory_space<vmem>>, vector<8x512xf32>,
    } else {
    }
    %11 = arith.extui %7 : i1 to i32
    %cst_3 = arith.constant 2.550000e+02 : f32
    %c0_i32_4 = arith.constant 0 : i32
    %12 = arith.cmpi ne, %11, %c0_i32_4 : i32
    scf.if %12 {
      %16 = tpu.iota {dimensions = array<i32: 0>} : vector<8x512xi32>
      %cst_7 = arith.constant 0.000000e+00 : f32
      %17 = vector.broadcast %cst_7 : f32 to vector<8x512xf32>
      %c0_i32_8 = arith.constant 0 : i32
      %c8_i32 = arith.constant 8 : i32
      %18 = arith.muli %c0_i32_8, %c8_i32 : i32
      %19 = tpu.assume_multiple %18, 8 : i32
      %20 = arith.index_cast %19 : i32 to index
      %c0 = arith.constant 0 : index
      %21 = vector.load %arg2[%20, %c0] : memref<16x512xf32, #tpu.memory_space<vmem>>, vector<8x512xf32>
      %22 = vector.broadcast %cst_3 : f32 to vector<8x512xf32>
      %23 = arith.cmpf one, %21, %22 : vector<8x512xf32>
      %c19_i32_9 = arith.constant 19 : i32
      %24 = arith.subi %c19_i32_9, %5 : i32
      %25 = arith.subi %24, %19 : i32
      %26 = vector.broadcast %25 : i32 to vector<8x512xi32>
      %27 = arith.cmpi slt, %16, %26 : vector<8x512xi32>
      %28 = arith.andi %23, %27 : vector<8x512xi1>
      %29 = arith.mulf %21, %21 : vector<8x512xf32>
      %cst_10 = arith.constant 0.000000e+00 : f32
      %30 = vector.broadcast %cst_10 : f32 to vector<8x512xf32>
      %31 = arith.select %28, %29, %30 : vector<8x512xi1>, vector<8x512xf32>
      %32 = arith.addf %17, %31 : vector<8x512xf32>
      %33 = arith.extui %28 : vector<8x512xi1> to vector<8x512xi32>
      %34 = arith.sitofp %33 : vector<8x512xi32> to vector<8x512xf32>
      %35 = arith.addf %17, %34 : vector<8x512xf32>
      %c1_i32_11 = arith.constant 1 : i32
      %c8_i32_12 = arith.constant 8 : i32
      %36 = arith.muli %c1_i32_11, %c8_i32_12 : i32
      %37 = tpu.assume_multiple %36, 8 : i32
      %38 = arith.index_cast %37 : i32 to index
      %c0_13 = arith.constant 0 : index
      %39 = vector.load %arg2[%38, %c0_13] : memref<16x512xf32, #tpu.memory_space<vmem>>, vector<8x512xf32>
      %40 = vector.broadcast %cst_3 : f32 to vector<8x512xf32>
      %41 = arith.cmpf one, %39, %40 : vector<8x512xf32>
      %c19_i32_14 = arith.constant 19 : i32
      %42 = arith.subi %c19_i32_14, %5 : i32
      %43 = arith.subi %42, %37 : i32
      %44 = vector.broadcast %43 : i32 to vector<8x512xi32>
      %45 = arith.cmpi slt, %16, %44 : vector<8x512xi32>
      %46 = arith.andi %41, %45 : vector<8x512xi1>
      %47 = arith.mulf %39, %39 : vector<8x512xf32>
      %cst_15 = arith.constant 0.000000e+00 : f32
      %48 = vector.broadcast %cst_15 : f32 to vector<8x512xf32>
      %49 = arith.select %46, %47, %48 : vector<8x512xi1>, vector<8x512xf32>
      %50 = arith.addf %32, %49 : vector<8x512xf32>
      %51 = arith.extui %46 : vector<8x512xi1> to vector<8x512xi32>
      %52 = arith.sitofp %51 : vector<8x512xi32> to vector<8x512xf32>
      %53 = arith.addf %35, %52 : vector<8x512xf32>
      %c2_i32 = arith.constant 2 : i32
      %c0_16 = arith.constant 0 : index
      %c0_17 = arith.constant 0 : index
      %54 = vector.load %arg5[%c0_16, %c0_17] : memref<8x512xf32, #tpu.memory_space<vmem>>, vector<8x512xf32>
      %55 = arith.addf %54, %50 : vector<8x512xf32>
      %c0_18 = arith.constant 0 : index
      %c0_19 = arith.constant 0 : index
      %56 = vector.load %arg5[%c0_18, %c0_19] : memref<8x512xf32, #tpu.memory_space<vmem>>, vector<8x512xf32>
      tpu.vector_store %arg5[%c0_18, %c0_19], %55 {strides = array<i32>} : memref<8x512xf32, #tpu.memory_space<vmem>>, vector<8x512xf32>,
      %c0_20 = arith.constant 0 : index
      %c0_21 = arith.constant 0 : index
      %57 = vector.load %arg6[%c0_20, %c0_21] : memref<8x512xf32, #tpu.memory_space<vmem>>, vector<8x512xf32>
      %58 = arith.addf %57, %53 : vector<8x512xf32>
      %c0_22 = arith.constant 0 : index
      %c0_23 = arith.constant 0 : index
      %59 = vector.load %arg6[%c0_22, %c0_23] : memref<8x512xf32, #tpu.memory_space<vmem>>, vector<8x512xf32>
      tpu.vector_store %arg6[%c0_22, %c0_23], %58 {strides = array<i32>} : memref<8x512xf32, #tpu.memory_space<vmem>>, vector<8x512xf32>,
    } else {
    }
    %c0_i32_5 = arith.constant 0 : i32
    %13 = arith.cmpi eq, %arg1, %c0_i32_5 : i32
    %14 = arith.extui %13 : i1 to i32
    %c0_i32_6 = arith.constant 0 : i32
    %15 = arith.cmpi ne, %14, %c0_i32_6 : i32
    scf.if %15 {
      %c0 = arith.constant 0 : index
      %c0_7 = arith.constant 0 : index
      %16 = vector.load %arg5[%c0, %c0_7] : memref<8x512xf32, #tpu.memory_space<vmem>>, vector<8x512xf32>
      %17 = vector.shape_cast %16 : vector<8x512xf32> to vector<1x8x512xf32>
      %cst_8 = arith.constant dense<0.000000e+00> : vector<1xf32>
      %18 = vector.multi_reduction <add>, %17, %cst_8 [1, 2] : vector<1x8x512xf32> to vector<1xf32>
      %19 = vector.shape_cast %18 : vector<1xf32> to vector<1x1x1xf32>
      %20 = vector.extract %19[0, 0, 0] : f32 from vector<1x1x1xf32>
      %21 = vector.broadcast %20 : f32 to vector<1x8x128xf32>
      %c0_9 = arith.constant 0 : index
      %c0_10 = arith.constant 0 : index
      %c0_11 = arith.constant 0 : index
      %22 = vector.load %arg3[%c0_9, %c0_10, %c0_11] : memref<1x8x128xf32, #tpu.memory_space<vmem>>, vector<1x8x128xf32>
      tpu.vector_store %arg3[%c0_9, %c0_10, %c0_11], %21 {strides = array<i32>} : memref<1x8x128xf32, #tpu.memory_space<vmem>>, vector<1x8x128xf32>,
      %c0_12 = arith.constant 0 : index
      %c0_13 = arith.constant 0 : index
      %23 = vector.load %arg6[%c0_12, %c0_13] : memref<8x512xf32, #tpu.memory_space<vmem>>, vector<8x512xf32>
      %24 = vector.shape_cast %23 : vector<8x512xf32> to vector<1x8x512xf32>
      %cst_14 = arith.constant dense<0.000000e+00> : vector<1xf32>
      %25 = vector.multi_reduction <add>, %24, %cst_14 [1, 2] : vector<1x8x512xf32> to vector<1xf32>
      %26 = vector.shape_cast %25 : vector<1xf32> to vector<1x1x1xf32>
      %27 = vector.extract %26[0, 0, 0] : f32 from vector<1x1x1xf32>
      %28 = vector.broadcast %27 : f32 to vector<1x8x128xf32>
      %c0_15 = arith.constant 0 : index
      %c0_16 = arith.constant 0 : index
      %c0_17 = arith.constant 0 : index
      %29 = vector.load %arg4[%c0_15, %c0_16, %c0_17] : memref<1x8x128xf32, #tpu.memory_space<vmem>>, vector<1x8x128xf32>
      tpu.vector_store %arg4[%c0_15, %c0_16, %c0_17], %28 {strides = array<i32>} : memref<1x8x128xf32, #tpu.memory_space<vmem>>, vector<1x8x128xf32>,
    } else {
    }
    return
  }
  func.func @transform_0(%arg0: i32, %arg1: i32) -> (i32, i32) {
    %c1_i32 = arith.constant 1 : i32
    %0 = arith.muli %arg0, %c1_i32 : i32
    %1 = arith.addi %0, %arg1 : i32
    %c1_i32_0 = arith.constant 1 : i32
    %2 = arith.minsi %1, %c1_i32_0 : i32
    %c0_i32 = arith.constant 0 : i32
    %c0_i32_1 = arith.constant 0 : i32
    return %2, %c0_i32 : i32, i32
  }
  func.func @transform_1(%arg0: i32, %arg1: i32) -> (i32, i32, i32) {
    %c0_i32 = arith.constant 0 : i32
    %c0_i32_0 = arith.constant 0 : i32
    %c0_i32_1 = arith.constant 0 : i32
    return %arg0, %c0_i32, %c0_i32_0 : i32, i32, i32
  }
  func.func @transform_2(%arg0: i32, %arg1: i32) -> (i32, i32, i32) {
    %c0_i32 = arith.constant 0 : i32
    %c0_i32_0 = arith.constant 0 : i32
    %c0_i32_1 = arith.constant 0 : i32
    return %arg0, %c0_i32, %c0_i32_0 : i32, i32, i32
  }
}

</mosaic_0001>

<llo_original>
// kernel: tar_loss.1
$region0: #{tar_loss.1}
  #allocation0 [shape = 'u32[]', space=smem, size = 0x4, offset = 0x4, fixed_abs, tag = 'smem constant byte address 0x4 - core index']
  #allocation1 [shape = 'u32[144,128]{1,0:T(1,128)}', space=vmem, size = 0x12000, scoped, tag = 'internal scratch']
  #allocation2 [shape = 'f32[8,512]{1,0:T(8,128)}', space=vmem, size = 0x4000, scoped, tag = 'scratch operand']
  #allocation3 [shape = 'f32[8,512]{1,0:T(8,128)}', space=vmem, size = 0x4000, scoped, tag = 'scratch operand']
  %s0 = inlined_call_operand.vmem [shape: f32[19,512], index: 0, kind: input, shape index: {}]
  %s1 = inlined_call_operand.vmem [shape: f32[2,8,128], index: 1, kind: output, shape index: {0}]
  %s2 = inlined_call_operand.vmem [shape: f32[2,8,128], index: 2, kind: output, shape index: {1}]
  %3 = xla_tuple %s1, %s2
  %s4 = sld [smem:[#allocation0]]
  $region61: #{tar_loss.1} parent=0
    _
  %s6 = ssub.s32 1, %s4
  %s7 = scalar_select 0, %s6, %s4
  loop: start=0, step=1, limit=4
  $region2: #{tar_loss.1} parent=0 // loop_pre_header
    _
  $region3: #{tar_loss.1} parent=0 // loop_header
    %s9 = sphi 0, %s13
    %p10 = scmp.ge.s32.totalorder %s9, 4
    %s16 = sphi 0, %s28
    %s17 = sphi 0, %s24
    %s18 = sphi 0, %s16
    %s19 = sphi 0, %s17
    %s20 = sphi 0, %s18
    %s21 = sphi 0, %s19
    %s37 = sphi 0, %s39
    %s40 = sphi 0, %s37
    %s41 = sphi 0, %s40
    %s57 = sphi 0, %s41
    %s63 = sphi 0, %s65
    %s66 = sphi 0, %s63
    %s67 = sphi 0, %s66
    %s83 = sphi 0, %s67
    %s89 = sphi 0, %s91
    %s92 = sphi 0, %s89
    %s93 = sphi 0, %s92
    %s109 = sphi 0, %s93
  $region4: #{tar_loss.1} parent=0 // loop_header_branch
    %12 = sbr.rel (%p10) target = $region8
  $region5: #{tar_loss.1} parent=0 // loop_body
    %s14 = ssub.s32 %s9, 1
    %s15 = ssub.s32 %s9, 2
    %s22 = sadd.s32 1, %s17
    %p23 = scmp.ge.s32.totalorder %s22, 1
    %s24 = scalar_select %p23, 0, %s22
    %s25 = sadd.s32 1, %s16
    %s26 = scalar_select %p23, %s25, %s16
    %p27 = scmp.ge.s32.totalorder %s26, 2
    %s28 = scalar_select %p27, 0, %s26
    %s29 = sadd.s32 %s16, %s17
    %p30 = scmp.lt.s32.totalorder %s29, 1
    %s31 = scalar_select %p30, %s29, 1
    %s32 = sadd.s32 %s28, %s24
    %p33 = scmp.lt.s32.totalorder %s32, 1
    %s34 = scalar_select %p33, %s32, 1
    %s35 = ssub.s32 %s31, %s34
    %p36 = scmp.eq.s32.totalorder %s35, 0
    %s38 = sadd.s32 %s37, 1
    %s39 = scalar_select %p36, %s37, %s38
    %p42 = pneg %p36
    %p43 = scmp.eq.s32.totalorder %s9, 1
    %p44 = por %p42, %p43
    %p45 = scmp.ne.s32.totalorder %s37, %s40
    %p46 = scmp.eq.s32.totalorder %s9, 0
    %p47 = por %p45, %p46
    %p48 = scmp.ne.s32.totalorder %s37, %s40
    %p49 = scmp.eq.s32.totalorder %s14, 1
    %p50 = por %p48, %p49
    %p51 = scmp.ne.s32.totalorder %s40, %s41
    %p52 = scmp.eq.s32.totalorder %s14, 0
    %p53 = por %p51, %p52
    %p54 = scmp.ne.s32.totalorder %s40, %s41
    %p55 = scmp.eq.s32.totalorder %s15, 1
    %p56 = por %p54, %p55
    %p58 = scmp.ne.s32.totalorder %s41, %s57
    %p59 = scmp.eq.s32.totalorder %s15, 0
    %p60 = por %p58, %p59
    %s61 = ssub.s32 %s16, %s28
    %p62 = scmp.eq.s32.totalorder %s61, 0
    %s64 = sadd.s32 %s63, 1
    %s65 = scalar_select %p62, %s63, %s64
    %p68 = pneg %p62
    %p69 = scmp.eq.s32.totalorder %s9, 1
    %p70 = por %p68, %p69
    %p71 = scmp.ne.s32.totalorder %s63, %s66
    %p72 = scmp.eq.s32.totalorder %s9, 0
    %p73 = por %p71, %p72
    %p74 = scmp.ne.s32.totalorder %s63, %s66
    %p75 = scmp.eq.s32.totalorder %s14, 1
    %p76 = por %p74, %p75
    %p77 = scmp.ne.s32.totalorder %s66, %s67
    %p78 = scmp.eq.s32.totalorder %s14, 0
    %p79 = por %p77, %p78
    %p80 = scmp.ne.s32.totalorder %s66, %s67
    %p81 = scmp.eq.s32.totalorder %s15, 1
    %p82 = por %p80, %p81
    %p84 = scmp.ne.s32.totalorder %s67, %s83
    %p85 = scmp.eq.s32.totalorder %s15, 0
    %p86 = por %p84, %p85
    %s87 = ssub.s32 %s16, %s28
    %p88 = scmp.eq.s32.totalorder %s87, 0
    %s90 = sadd.s32 %s89, 1
    %s91 = scalar_select %p88, %s89, %s90
    %p94 = pneg %p88
    %p95 = scmp.eq.s32.totalorder %s9, 1
    %p96 = por %p94, %p95
    %p97 = scmp.ne.s32.totalorder %s89, %s92
    %p98 = scmp.eq.s32.totalorder %s9, 0
    %p99 = por %p97, %p98
    %p100 = scmp.ne.s32.totalorder %s89, %s92
    %p101 = scmp.eq.s32.totalorder %s14, 1
    %p102 = por %p100, %p101
    %p103 = scmp.ne.s32.totalorder %s92, %s93
    %p104 = scmp.eq.s32.totalorder %s14, 0
    %p105 = por %p103, %p104
    %p106 = scmp.ne.s32.totalorder %s92, %s93
    %p107 = scmp.eq.s32.totalorder %s15, 1
    %p108 = por %p106, %p107
    %p110 = scmp.ne.s32.totalorder %s93, %s109
    %p111 = scmp.eq.s32.totalorder %s15, 0
    %p112 = por %p110, %p111
    %p113 = scmp.le.s32.totalorder 1, %s9
    %p114 = scmp.lt.s32.totalorder %s9, 3
    %p115 = pnand %p113, %p114
    %p116 = pneg %p115
    // Predicated region
    $region9: #{tar_loss.1} parent=5 // pred_check
      _
    $region10: #{tar_loss.1} parent=5 // pred_check_branch
      %118 = sbr.rel (%p115) target = $region12
    $region11: #{tar_loss.1} parent=5 // pred_region
      %s119 = ssub.s32 %s9, 1
    $region12: #{tar_loss.1} parent=5 // pred_fallthru
      _
    %p120 = scmp.lt.s32.totalorder %s9, 2
    // Predicated region
    $region13: #{tar_loss.1} parent=5 // pred_check
      %p121 = pneg %p120
    $region14: #{tar_loss.1} parent=5 // pred_check_branch
      %123 = sbr.rel (%p121) target = $region16
    $region15: #{tar_loss.1} parent=5 // pred_region
      // Predicated region
      $region17: #{tar_loss.1} parent=15 // pred_check
        %p124 = pneg %p47
      $region18: #{tar_loss.1} parent=15 // pred_check_branch
        %126 = sbr.rel (%p124) target = $region20
      $region19: #{tar_loss.1} parent=15 // pred_region
        %s127 = sadd.s32 %s16, %s17
        %p128 = scmp.lt.s32.totalorder %s127, 1
        %s129 = scalar_select %p128, %s127, 1
        %s130 = smul.u32 2, %s129
        %s131 = ssub.s32 3, %s130
        %p132 = scmp.lt.s32.totalorder %s131, 2
        %s133 = scalar_select %p132, %s131, 2
        %s134 = smul.u32 128, %s133
        %s135 = smul.u32 %s134, 4
        %p136 = scmp.lt.s32.totalorder %s130, 2
        %s137 = scalar_select %p136, %s130, 2
        %s138 = smul.addr %s137, 4
        %s139 = smul.addr %s138, 8
        %s140 = scalar_lea.vmem %s0, %s139
        %s141 = sadd.s32 %s16, %s17
        %p142 = scmp.lt.s32.totalorder %s141, 1
        %s143 = scalar_select %p142, %s141, 1
        %s144 = smul.u32 2, %s143
        %s145 = ssub.s32 3, %s144
        %p146 = scmp.lt.s32.totalorder %s145, 2
        %s147 = scalar_select %p146, %s145, 2
        %s148 = smul.u32 128, %s147
        %s149 = smul.u32 %s148, 4
      $region20: #{tar_loss.1} parent=15 // pred_fallthru
        _
    $region16: #{tar_loss.1} parent=5 // pred_fallthru
      _
    %p150 = scmp.le.s32.totalorder 1, %s9
    %p151 = scmp.lt.s32.totalorder %s9, 3
    %p152 = pnand %p150, %p151
    %p153 = pneg %p152
    // Predicated region
    $region21: #{tar_loss.1} parent=5 // pred_check
      _
    $region22: #{tar_loss.1} parent=5 // pred_check_branch
      %155 = sbr.rel (%p152) target = $region24
    $region23: #{tar_loss.1} parent=5 // pred_region
      %s156 = ssub.s32 %s9, 1
      %s157 = sadd.s32 %s18, %s19
      %p158 = scmp.lt.s32.totalorder %s157, 1
      %s159 = scalar_select %p158, %s157, 1
      %s160 = smul.u32 2, %s159
      %s161 = ssub.s32 3, %s160
      %p162 = scmp.lt.s32.totalorder %s161, 2
      %s163 = scalar_select %p162, %s161, 2
      %s164 = smul.u32 128, %s163
      %s165 = smul.u32 %s164, 4
      %p166 = scmp.lt.s32.totalorder %s160, 2
      %s167 = scalar_select %p166, %s160, 2
      %s168 = smul.addr %s167, 4
      %s169 = smul.addr %s168, 8
      %s170 = scalar_lea.vmem %s0, %s169
      %p171 = pneg %p53
      %p172 = pneg %p50
      %p173 = pneg %p79
      %p174 = pneg %p76
      %p175 = scmp.lt.s32.totalorder %s18, 1
      %s176 = scalar_select %p175, %s18, 1
      %s177 = smul.addr %s176, 8
      %s178 = scalar_lea.vmem %s1, %s177
      %p179 = pneg %p105
      %p180 = pneg %p102
      %p181 = scmp.lt.s32.totalorder %s18, 1
      %s182 = scalar_select %p181, %s18, 1
      %s183 = smul.addr %s182, 8
      %s184 = scalar_lea.vmem %s2, %s183
      %s185 = sadd.s32 %s18, %s19
      %p186 = scmp.lt.s32.totalorder %s185, 1
      %s187 = scalar_select %p186, %s185, 1
      %s188 = smul.u32 2, %s187
      %s189 = ssub.s32 3, %s188
      %p190 = scmp.lt.s32.totalorder %s189, 2
      %s191 = scalar_select %p190, %s189, 2
      %s192 = smul.u32 128, %s191
      %s193 = smul.u32 %s192, 4
      %p194 = scmp.lt.s32.totalorder %s188, 2
      %s195 = scalar_select %p194, %s188, 2
      %s196 = smul.addr %s195, 4
      %s197 = smul.addr %s196, 8
      %s198 = scalar_lea.vmem %s0, %s197
      %s199 = sadd.s32 %s18, %s19
      %p200 = scmp.lt.s32.totalorder %s199, 1
      %s201 = scalar_select %p200, %s199, 1
      %s202 = smul.u32 2, %s201
      %s203 = ssub.s32 3, %s202
      %p204 = scmp.lt.s32.totalorder %s203, 2
      %s205 = scalar_select %p204, %s203, 2
      %s206 = smul.u32 128, %s205
      %s207 = smul.u32 %s206, 4
      %p208 = scmp.lt.s32.totalorder %s18, 1
      %s209 = scalar_select %p208, %s18, 1
      %s210 = smul.addr %s209, 8
      %s211 = scalar_lea.vmem %s1, %s210
      %p212 = scmp.lt.s32.totalorder %s18, 1
      %s213 = scalar_select %p212, %s18, 1
      %s214 = smul.addr %s213, 8
      %s215 = scalar_lea.vmem %s2, %s214
      %p216 = scmp.eq.s32.totalorder %s19, 0
      // Predicated region
      $region25: #{tar_loss.1} parent=23 // pred_check
        %p217 = pneg %p216
      $region26: #{tar_loss.1} parent=23 // pred_check_branch
        %219 = sbr.rel (%p217) target = $region28
      $region27: #{tar_loss.1} parent=23 // pred_region
        %220 = vst [vmem:[#allocation2] sm:$0xff] 0.0
        %221 = vst [vmem:[#allocation2 + $0x8] sm:$0xff] 0.0
        %222 = vst [vmem:[#allocation2 + $0x10] sm:$0xff] 0.0
        %223 = vst [vmem:[#allocation2 + $0x18] sm:$0xff] 0.0
        %224 = vst [vmem:[#allocation3] sm:$0xff] 0.0
        %225 = vst [vmem:[#allocation3 + $0x8] sm:$0xff] 0.0
        %226 = vst [vmem:[#allocation3 + $0x10] sm:$0xff] 0.0
        %227 = vst [vmem:[#allocation3 + $0x18] sm:$0xff] 0.0
      $region28: #{tar_loss.1} parent=23 // pred_fallthru
        _
      %s228 = sadd.s32 %s18, %s19
      %s229 = smul.u32 %s228, 16
      %s230 = sadd.s32 %s229, 16
      %p231 = scmp.gt.s32.totalorder %s230, 19
      %p232 = scmp.le.s32.totalorder %s230, 19
      // Predicated region
      $region29: #{tar_loss.1} parent=23 // pred_check
        %p233 = pneg %p232
      $region30: #{tar_loss.1} parent=23 // pred_check_branch
        %235 = sbr.rel (%p233) target = $region32
      $region31: #{tar_loss.1} parent=23 // pred_region
        %s236 = smul.u32 0, 4
        %s237 = smul.addr %s236, 8
        %s238 = scalar_lea.vmem %s198, %s237
        %v239 = vld [vmem:[%s238] sm:$0xff]
        %v240 = vld [vmem:[%s238 + $0x8] sm:$0xff]
        %v241 = vld [vmem:[%s238 + $0x10] sm:$0xff]
        %v242 = vld [vmem:[%s238 + $0x18] sm:$0xff]
        %vm243 = vcmp.ne.f32.partialorder %v239, 255.0
        %vm244 = vcmp.ne.f32.partialorder %v240, 255.0
        %vm245 = vcmp.ne.f32.partialorder %v241, 255.0
        %vm246 = vcmp.ne.f32.partialorder %v242, 255.0
        %v247 = vmul.f32 %v239, %v239
        %v248 = vmul.f32 %v240, %v240
        %v249 = vmul.f32 %v241, %v241
        %v250 = vmul.f32 %v242, %v242
        %v251 = vsel %vm243, %v247, 0.0
        %v252 = vsel %vm244, %v248, 0.0
        %v253 = vsel %vm245, %v249, 0.0
        %v254 = vsel %vm246, %v250, 0.0
        %v255 = vadd.f32 %v251, 0.0
        %v256 = vadd.f32 %v252, 0.0
        %v257 = vadd.f32 %v253, 0.0
        %v258 = vadd.f32 %v254, 0.0
        %v259 = vsel %vm243, 1, 0
        %v260 = vsel %vm244, 1, 0
        %v261 = vsel %vm245, 1, 0
        %v262 = vsel %vm246, 1, 0
        %v263 = vcvt.s32.f32 %v259
        %v264 = vcvt.s32.f32 %v260
        %v265 = vcvt.s32.f32 %v261
        %v266 = vcvt.s32.f32 %v262
        %v267 = vadd.f32 %v263, 0.0
        %v268 = vadd.f32 %v264, 0.0
        %v269 = vadd.f32 %v265, 0.0
        %v270 = vadd.f32 %v266, 0.0
        %s271 = smul.u32 1, 4
        %s272 = smul.addr %s271, 8
        %s273 = scalar_lea.vmem %s198, %s272
        %v274 = vld [vmem:[%s273] sm:$0xff]
        %v275 = vld [vmem:[%s273 + $0x8] sm:$0xff]
        %v276 = vld [vmem:[%s273 + $0x10] sm:$0xff]
        %v277 = vld [vmem:[%s273 + $0x18] sm:$0xff]
        %vm278 = vcmp.ne.f32.partialorder %v274, 255.0
        %vm279 = vcmp.ne.f32.partialorder %v275, 255.0
        %vm280 = vcmp.ne.f32.partialorder %v276, 255.0
        %vm281 = vcmp.ne.f32.partialorder %v277, 255.0
        %v282 = vmul.f32 %v274, %v274
        %v283 = vmul.f32 %v275, %v275
        %v284 = vmul.f32 %v276, %v276
        %v285 = vmul.f32 %v277, %v277
        %v286 = vsel %vm278, %v282, 0.0
        %v287 = vsel %vm279, %v283, 0.0
        %v288 = vsel %vm280, %v284, 0.0
        %v289 = vsel %vm281, %v285, 0.0
        %v290 = vadd.f32 %v255, %v286
        %v291 = vadd.f32 %v256, %v287
        %v292 = vadd.f32 %v257, %v288
        %v293 = vadd.f32 %v258, %v289
        %v294 = vsel %vm278, 1, 0
        %v295 = vsel %vm279, 1, 0
        %v296 = vsel %vm280, 1, 0
        %v297 = vsel %vm281, 1, 0
        %v298 = vcvt.s32.f32 %v294
        %v299 = vcvt.s32.f32 %v295
        %v300 = vcvt.s32.f32 %v296
        %v301 = vcvt.s32.f32 %v297
        %v302 = vadd.f32 %v267, %v298
        %v303 = vadd.f32 %v268, %v299
        %v304 = vadd.f32 %v269, %v300
        %v305 = vadd.f32 %v270, %v301
        %v306 = vld [vmem:[#allocation2] sm:$0xff]
        %v307 = vld [vmem:[#allocation2 + $0x8] sm:$0xff]
        %v308 = vld [vmem:[#allocation2 + $0x10] sm:$0xff]
        %v309 = vld [vmem:[#allocation2 + $0x18] sm:$0xff]
        %v310 = vadd.f32 %v306, %v290
        %v311 = vadd.f32 %v307, %v291
        %v312 = vadd.f32 %v308, %v292
        %v313 = vadd.f32 %v309, %v293
        %314 = vst [vmem:[#allocation2] sm:$0xff] %v310
        %315 = vst [vmem:[#allocation2 + $0x8] sm:$0xff] %v311
        %316 = vst [vmem:[#allocation2 + $0x10] sm:$0xff] %v312
        %317 = vst [vmem:[#allocation2 + $0x18] sm:$0xff] %v313
        %v318 = vld [vmem:[#allocation3] sm:$0xff]
        %v319 = vld [vmem:[#allocation3 + $0x8] sm:$0xff]
        %v320 = vld [vmem:[#allocation3 + $0x10] sm:$0xff]
        %v321 = vld [vmem:[#allocation3 + $0x18] sm:$0xff]
        %v322 = vadd.f32 %v318, %v302
        %v323 = vadd.f32 %v319, %v303
        %v324 = vadd.f32 %v320, %v304
        %v325 = vadd.f32 %v321, %v305
        %326 = vst [vmem:[#allocation3] sm:$0xff] %v322
        %327 = vst [vmem:[#allocation3 + $0x8] sm:$0xff] %v323
        %328 = vst [vmem:[#allocation3 + $0x10] sm:$0xff] %v324
        %329 = vst [vmem:[#allocation3 + $0x18] sm:$0xff] %v325
      $region32: #{tar_loss.1} parent=23 // pred_fallthru
        _
      // Predicated region
      $region33: #{tar_loss.1} parent=23 // pred_check
        %p330 = pneg %p231
      $region34: #{tar_loss.1} parent=23 // pred_check_branch
        %332 = sbr.rel (%p330) target = $region36
      $region35: #{tar_loss.1} parent=23 // pred_region
        %v333 = vlaneseq
        %v334 = vshrl.u32 %v333, 7
        %s335 = smul.u32 0, 4
        %s336 = smul.addr %s335, 8
        %s337 = scalar_lea.vmem %s198, %s336
        %v338 = vld [vmem:[%s337] sm:$0xff]
        %v339 = vld [vmem:[%s337 + $0x8] sm:$0xff]
        %v340 = vld [vmem:[%s337 + $0x10] sm:$0xff]
        %v341 = vld [vmem:[%s337 + $0x18] sm:$0xff]
        %vm342 = vcmp.ne.f32.partialorder %v338, 255.0
        %vm343 = vcmp.ne.f32.partialorder %v339, 255.0
        %vm344 = vcmp.ne.f32.partialorder %v340, 255.0
        %vm345 = vcmp.ne.f32.partialorder %v341, 255.0
        %s346 = ssub.s32 19, %s229
        %s347 = ssub.s32 %s346, 0
        %v348 = vstv %s347
        %vm349 = vcmp.lt.s32.totalorder %v334, %v348
        %vm350 = vmand %vm342, %vm349
        %vm351 = vmand %vm343, %vm349
        %vm352 = vmand %vm344, %vm349
        %vm353 = vmand %vm345, %vm349
        %v354 = vmul.f32 %v338, %v338
        %v355 = vmul.f32 %v339, %v339
        %v356 = vmul.f32 %v340, %v340
        %v357 = vmul.f32 %v341, %v341
        %v358 = vsel %vm350, %v354, 0.0
        %v359 = vsel %vm351, %v355, 0.0
        %v360 = vsel %vm352, %v356, 0.0
        %v361 = vsel %vm353, %v357, 0.0
        %v362 = vadd.f32 %v358, 0.0
        %v363 = vadd.f32 %v359, 0.0
        %v364 = vadd.f32 %v360, 0.0
        %v365 = vadd.f32 %v361, 0.0
        %v366 = vsel %vm350, 1, 0
        %v367 = vsel %vm351, 1, 0
        %v368 = vsel %vm352, 1, 0
        %v369 = vsel %vm353, 1, 0
        %v370 = vcvt.s32.f32 %v366
        %v371 = vcvt.s32.f32 %v367
        %v372 = vcvt.s32.f32 %v368
        %v373 = vcvt.s32.f32 %v369
        %v374 = vadd.f32 %v370, 0.0
        %v375 = vadd.f32 %v371, 0.0
        %v376 = vadd.f32 %v372, 0.0
        %v377 = vadd.f32 %v373, 0.0
        %s378 = smul.u32 1, 4
        %s379 = smul.addr %s378, 8
        %s380 = scalar_lea.vmem %s198, %s379
        %v381 = vld [vmem:[%s380] sm:$0xff]
        %v382 = vld [vmem:[%s380 + $0x8] sm:$0xff]
        %v383 = vld [vmem:[%s380 + $0x10] sm:$0xff]
        %v384 = vld [vmem:[%s380 + $0x18] sm:$0xff]
        %vm385 = vcmp.ne.f32.partialorder %v381, 255.0
        %vm386 = vcmp.ne.f32.partialorder %v382, 255.0
        %vm387 = vcmp.ne.f32.partialorder %v383, 255.0
        %vm388 = vcmp.ne.f32.partialorder %v384, 255.0
        %s389 = ssub.s32 %s346, 8
        %v390 = vstv %s389
        %vm391 = vcmp.lt.s32.totalorder %v334, %v390
        %vm392 = vmand %vm385, %vm391
        %vm393 = vmand %vm386, %vm391
        %vm394 = vmand %vm387, %vm391
        %vm395 = vmand %vm388, %vm391
        %v396 = vmul.f32 %v381, %v381
        %v397 = vmul.f32 %v382, %v382
        %v398 = vmul.f32 %v383, %v383
        %v399 = vmul.f32 %v384, %v384
        %v400 = vsel %vm392, %v396, 0.0
        %v401 = vsel %vm393, %v397, 0.0
        %v402 = vsel %vm394, %v398, 0.0
        %v403 = vsel %vm395, %v399, 0.0
        %v404 = vadd.f32 %v362, %v400
        %v405 = vadd.f32 %v363, %v401
        %v406 = vadd.f32 %v364, %v402
        %v407 = vadd.f32 %v365, %v403
        %v408 = vsel %vm392, 1, 0
        %v409 = vsel %vm393, 1, 0
        %v410 = vsel %vm394, 1, 0
        %v411 = vsel %vm395, 1, 0
        %v412 = vcvt.s32.f32 %v408
        %v413 = vcvt.s32.f32 %v409
        %v414 = vcvt.s32.f32 %v410
        %v415 = vcvt.s32.f32 %v411
        %v416 = vadd.f32 %v374, %v412
        %v417 = vadd.f32 %v375, %v413
        %v418 = vadd.f32 %v376, %v414
        %v419 = vadd.f32 %v377, %v415
        %v420 = vld [vmem:[#allocation2] sm:$0xff]
        %v421 = vld [vmem:[#allocation2 + $0x8] sm:$0xff]
        %v422 = vld [vmem:[#allocation2 + $0x10] sm:$0xff]
        %v423 = vld [vmem:[#allocation2 + $0x18] sm:$0xff]
        %v424 = vadd.f32 %v420, %v404
        %v425 = vadd.f32 %v421, %v405
        %v426 = vadd.f32 %v422, %v406
        %v427 = vadd.f32 %v423, %v407
        %428 = vst [vmem:[#allocation2] sm:$0xff] %v424
        %429 = vst [vmem:[#allocation2 + $0x8] sm:$0xff] %v425
        %430 = vst [vmem:[#allocation2 + $0x10] sm:$0xff] %v426
        %431 = vst [vmem:[#allocation2 + $0x18] sm:$0xff] %v427
        %v432 = vld [vmem:[#allocation3] sm:$0xff]
        %v433 = vld [vmem:[#allocation3 + $0x8] sm:$0xff]
        %v434 = vld [vmem:[#allocation3 + $0x10] sm:$0xff]
        %v435 = vld [vmem:[#allocation3 + $0x18] sm:$0xff]
        %v436 = vadd.f32 %v432, %v416
        %v437 = vadd.f32 %v433, %v417
        %v438 = vadd.f32 %v434, %v418
        %v439 = vadd.f32 %v435, %v419
        %440 = vst [vmem:[#allocation3] sm:$0xff] %v436
        %441 = vst [vmem:[#allocation3 + $0x8] sm:$0xff] %v437
        %442 = vst [vmem:[#allocation3 + $0x10] sm:$0xff] %v438
        %443 = vst [vmem:[#allocation3 + $0x18] sm:$0xff] %v439
      $region36: #{tar_loss.1} parent=23 // pred_fallthru
        _
      // Predicated region
      $region37: #{tar_loss.1} parent=23 // pred_check
        %p444 = pneg %p216
      $region38: #{tar_loss.1} parent=23 // pred_check_branch
        %446 = sbr.rel (%p444) target = $region40
      $region39: #{tar_loss.1} parent=23 // pred_region
        %v447 = vld [vmem:[#allocation2] sm:$0xff]
        %v448 = vld [vmem:[#allocation2 + $0x8] sm:$0xff]
        %v449 = vld [vmem:[#allocation2 + $0x10] sm:$0xff]
        %v450 = vld [vmem:[#allocation2 + $0x18] sm:$0xff]
        %v451 = vadd.f32 %v447, %v448
        %v452 = vadd.f32 %v451, %v449
        %v453 = vadd.f32 %v452, %v450
        %454 = vadd.xlane.f32.xlu0 %v453
        %v455 = vpop.xlane.xlu0 %454
        %v456 = vrot.slane %v455, 4
        %v457 = vadd.f32 %v455, %v456
        %v458 = vrot.slane %v457, 2
        %v459 = vadd.f32 %v457, %v458
        %v460 = vrot.slane %v459, 1
        %v461 = vadd.f32 %v459, %v460
        %s462 = vtos %v461
        %v463 = vstv %s462
        %464 = vst [vmem:[%s211] sm:$0xff] %v463
        %v465 = vld [vmem:[#allocation3] sm:$0xff]
        %v466 = vld [vmem:[#allocation3 + $0x8] sm:$0xff]
        %v467 = vld [vmem:[#allocation3 + $0x10] sm:$0xff]
        %v468 = vld [vmem:[#allocation3 + $0x18] sm:$0xff]
        %v469 = vadd.f32 %v465, %v466
        %v470 = vadd.f32 %v469, %v467
        %v471 = vadd.f32 %v470, %v468
        %472 = vadd.xlane.f32.xlu0 %v471
        %v473 = vpop.xlane.xlu0 %472
        %v474 = vrot.slane %v473, 4
        %v475 = vadd.f32 %v473, %v474
        %v476 = vrot.slane %v475, 2
        %v477 = vadd.f32 %v475, %v476
        %v478 = vrot.slane %v477, 1
        %v479 = vadd.f32 %v477, %v478
        %s480 = vtos %v479
        %v481 = vstv %s480
        %482 = vst [vmem:[%s215] sm:$0xff] %v481
      $region40: #{tar_loss.1} parent=23 // pred_fallthru
        _
      %p483 = scmp.lt.s32.totalorder %s18, 1
      %s484 = scalar_select %p483, %s18, 1
      %s485 = smul.addr %s484, 8
      %s486 = scalar_lea.vmem %s1, %s485
      %p487 = scmp.lt.s32.totalorder %s18, 1
      %s488 = scalar_select %p487, %s18, 1
      %s489 = smul.addr %s488, 8
      %s490 = scalar_lea.vmem %s2, %s489
      // Predicated region
      $region41: #{tar_loss.1} parent=23 // pred_check
        %p491 = pneg %p76
      $region42: #{tar_loss.1} parent=23 // pred_check_branch
        %493 = sbr.rel (%p491) target = $region44
      $region43: #{tar_loss.1} parent=23 // pred_region
        _
      $region44: #{tar_loss.1} parent=23 // pred_fallthru
        _
      // Predicated region
      $region45: #{tar_loss.1} parent=23 // pred_check
        %p494 = pneg %p102
      $region46: #{tar_loss.1} parent=23 // pred_check_branch
        %496 = sbr.rel (%p494) target = $region48
      $region47: #{tar_loss.1} parent=23 // pred_region
        _
      $region48: #{tar_loss.1} parent=23 // pred_fallthru
        _
    $region24: #{tar_loss.1} parent=5 // pred_fallthru
      _
    %p497 = scmp.le.s32.totalorder 2, %s9
    // Predicated region
    $region49: #{tar_loss.1} parent=5 // pred_check
      %p498 = pneg %p497
    $region50: #{tar_loss.1} parent=5 // pred_check_branch
      %500 = sbr.rel (%p498) target = $region52
    $region51: #{tar_loss.1} parent=5 // pred_region
      %s501 = ssub.s32 %s9, 2
      // Predicated region
      $region53: #{tar_loss.1} parent=51 // pred_check
        %p502 = pneg %p82
      $region54: #{tar_loss.1} parent=51 // pred_check_branch
        %504 = sbr.rel (%p502) target = $region56
      $region55: #{tar_loss.1} parent=51 // pred_region
        %p505 = scmp.lt.s32.totalorder %s20, 1
        %s506 = scalar_select %p505, %s20, 1
        %s507 = smul.addr %s506, 8
        %s508 = scalar_lea.vmem %s1, %s507
      $region56: #{tar_loss.1} parent=51 // pred_fallthru
        _
      // Predicated region
      $region57: #{tar_loss.1} parent=51 // pred_check
        %p509 = pneg %p108
      $region58: #{tar_loss.1} parent=51 // pred_check_branch
        %511 = sbr.rel (%p509) target = $region60
      $region59: #{tar_loss.1} parent=51 // pred_region
        %p512 = scmp.lt.s32.totalorder %s20, 1
        %s513 = scalar_select %p512, %s20, 1
        %s514 = smul.addr %s513, 8
        %s515 = scalar_lea.vmem %s2, %s514
      $region60: #{tar_loss.1} parent=51 // pred_fallthru
        _
    $region52: #{tar_loss.1} parent=5 // pred_fallthru
      _
  $region6: #{tar_loss.1} parent=0 // loop_footer
    %s13 = sadd.s32 1, %s9
  $region7: #{tar_loss.1} parent=0 // loop_footer_branch
    %8 = sbr.rel target = $region3
  $region8: #{tar_loss.1} parent=0 // loop_exit
    _

</llo_original>
